<compile_context>
chip_gen: v5e
topology: v5e:2x2
jax: 0.10.0
libtpu: 0.0.40
codegen_flags: <defaults>
</compile_context>

<pallas_src>
import math

import jax
import jax.numpy as jnp
from jax import lax
from jax.experimental import pallas as pl
from jax.experimental.pallas import tpu as pltpu


def _mlp_eval_kernel(lat_ref, hp_ref, w1a_ref, aux_ref, o_ref):
    """One independent forward: lat (B, n_input), hp (B, 2) -> logits (B, C).

    aux_ref rows (f32, (8, H)):
      [0:2]       w1b   -- headpose columns of Linear-1 weight, transposed (2, H)
      [2:2+C]     w2t   -- Linear-2 weight, lane-dense (C, H)
      [2+C]       gamma
      [3+C]       beta
      [4+C]       b2 padded to H lanes (valid in lanes [0, C))
    """
    C = o_ref.shape[-1]

    # ---- Linear 1 main contraction on the MXU (bf16 inputs, f32 accumulation) ----
    # b1 omitted: exactly cancelled by the training-mode BN batch-mean subtraction.
    lat = lat_ref[...]
    w1a = w1a_ref[...]
    if lat.dtype != w1a.dtype:
        lat = lat.astype(w1a.dtype)
    h = jnp.dot(lat, w1a, preferred_element_type=jnp.float32)          # (B, H) f32

    # Headpose contribution as a rank-2 VPU update (no K=2 / K=130 matmul).
    hp = hp_ref[...].astype(jnp.float32)                               # (B, 2)
    w1b = aux_ref[0:2, :]                                              # (2, H)
    h = h + hp[:, 0:1] * w1b[0:1, :] + hp[:, 1:2] * w1b[1:2, :]

    # ---- BatchNorm1d, training mode (batch mean, biased variance, eps=1e-5) ----
    gamma = aux_ref[2 + C:3 + C, :]                                    # (1, H)
    beta = aux_ref[3 + C:4 + C, :]                                     # (1, H)
    mean = jnp.mean(h, axis=0, keepdims=True)                          # (1, H)
    var = jnp.mean((h - mean) * (h - mean), axis=0, keepdims=True)     # (1, H)
    scale = gamma * lax.rsqrt(var + 1e-5)
    shift = beta - mean * scale
    h = h * scale + shift

    # ---- exact GELU: 0.5 * x * (1 + erf(x / sqrt(2))) ----
    h = 0.5 * h * (1.0 + lax.erf(h * (1.0 / math.sqrt(2.0))))

    # ---- Linear 2: contract over H with lane-dense (C, H) weight ----
    w2t = aux_ref[2:2 + C, :]                                          # (C, H)
    out = lax.dot_general(h, w2t,
                          dimension_numbers=(((1,), (1,)), ((), ())),
                          preferred_element_type=jnp.float32)          # (B, C)
    b2 = aux_ref[4 + C:5 + C, 0:C]                                     # (1, C)
    o_ref[...] = (out + b2).astype(o_ref.dtype)


def pack_params(w1, b1, gamma, beta, w2, b2, *, n_input=128,
                mxu_dtype=jnp.bfloat16):
    """Pack PyTorch-layout tensors into the kernel-ready param dict (done ONCE).

    Torch layout: w1 (H, n_input+2), b1 (H,), gamma (H,), beta (H,),
                  w2 (C, H), b2 (C,).
    b1 is dropped: mathematically exact under training-mode BatchNorm.
    """
    del b1
    H = w1.shape[0]
    C = w2.shape[0]
    w1 = jnp.asarray(w1, jnp.float32)
    w1a = w1[:, :n_input].T.astype(mxu_dtype)                    # (n_input, H)
    w1b = w1[:, n_input:].T                                      # (2, H) f32
    w2t = jnp.asarray(w2, jnp.float32)                           # (C, H)
    b2_row = jnp.zeros((1, H), jnp.float32).at[0, :C].set(
        jnp.asarray(b2, jnp.float32).reshape(C))
    aux = jnp.concatenate(
        [w1b, w2t,
         jnp.asarray(gamma, jnp.float32).reshape(1, H),
         jnp.asarray(beta, jnp.float32).reshape(1, H),
         b2_row], axis=0)
    pad = (-aux.shape[0]) % 8
    if pad:
        aux = jnp.concatenate([aux, jnp.zeros((pad, H), jnp.float32)], axis=0)
    return {"w1a": w1a, "aux": aux, "n_classes": int(C), "n_input": int(n_input)}


def init_params(key, n_input=128, n_classes=2, n_hidden=512,
                mxu_dtype=jnp.bfloat16):
    """Deterministic init mirroring PyTorch defaults (U(-1/sqrt(fan_in), ...))."""
    d_in = n_input + 2
    k1, k2, k3 = jax.random.split(key, 3)
    lim1 = 1.0 / math.sqrt(d_in)
    lim2 = 1.0 / math.sqrt(n_hidden)
    w1 = jax.random.uniform(k1, (n_hidden, d_in), jnp.float32, -lim1, lim1)
    w2 = jax.random.uniform(k2, (n_classes, n_hidden), jnp.float32, -lim2, lim2)
    b2 = jax.random.uniform(k3, (n_classes,), jnp.float32, -lim2, lim2)
    gamma = jnp.ones((n_hidden,), jnp.float32)
    beta = jnp.zeros((n_hidden,), jnp.float32)
    b1 = jnp.zeros((n_hidden,), jnp.float32)    # dropped by pack_params anyway
    return pack_params(w1, b1, gamma, beta, w2, b2,
                       n_input=n_input, mxu_dtype=mxu_dtype)


def mlp_evaluator_forward(latent, headpose, params):
    """Run the MLPEvaluator forward.

    latent:   (B, n_input) or (S, B, n_input) float32
    headpose: (B, 2)       or (S, B, 2)
    Returns logits (B, C) or (S, B, C) float32.  Each leading-S slice is an
    independent forward (its own BatchNorm batch statistics), matching S calls
    of the PyTorch module; batching them amortizes the weight DMA to once.
    """
    squeeze = latent.ndim == 2
    if squeeze:
        latent = latent[None]
        headpose = headpose[None]
    S, B, n_input = latent.shape
    H = params["w1a"].shape[1]
    C = int(params["n_classes"])
    aux = params["aux"]
    aux_rows = aux.shape[0]

    # Advisory cost hint for XLA scheduling around the call.
    flops = S * (2 * B * (n_input + 2) * H + 2 * B * H * C + 12 * B * H)
    transcendentals = S * B * H
    bytes_accessed = (
        params["w1a"].size * params["w1a"].dtype.itemsize
        + aux.size * aux.dtype.itemsize
        + S * (B * n_input * latent.dtype.itemsize + B * 2 * 4 + B * C * 4))

    out = pl.pallas_call(
        _mlp_eval_kernel,
        out_shape=jax.ShapeDtypeStruct((S, B, C), jnp.float32),
        grid=(S,),
        in_specs=[
            # Activations: one micro-batch per grid step.
            pl.BlockSpec((None, B, n_input), lambda s: (s, 0, 0)),
            pl.BlockSpec((None, B, 2), lambda s: (s, 0, 0)),
            # Weights: constant block index -> DMA'd once, VMEM-resident across steps.
            pl.BlockSpec((n_input, H), lambda s: (0, 0)),
            pl.BlockSpec((aux_rows, H), lambda s: (0, 0)),
        ],
        out_specs=pl.BlockSpec((None, B, C), lambda s: (s, 0, 0)),
        compiler_params=pltpu.CompilerParams(
            dimension_semantics=("parallel",)),   # shards steps across v7x's 2 TCs
        cost_estimate=pl.CostEstimate(flops=flops,
                                      transcendentals=transcendentals,
                                      bytes_accessed=bytes_accessed),
    )(latent, headpose.astype(jnp.float32), params["w1a"], aux)

    return out[0] if squeeze else out


if __name__ == "__main__":
    n_input, n_classes, n_hidden = 128, 2, 512
    batch, steps = 8, 4

    key = jax.random.PRNGKey(0)
    k_lat, k_hp, k_par = jax.random.split(key, 3)

    latent = jax.random.normal(k_lat, (steps, batch, n_input), jnp.float32)
    headpose = jax.random.normal(k_hp, (steps, batch, 2), jnp.float32)
    params = init_params(k_par, n_input, n_classes, n_hidden)

    # Batched path: S independent forwards, weights DMA'd once.
    logits = mlp_evaluator_forward(latent, headpose, params)
    jax.block_until_ready(logits)

    # Single-forward path (matches one module call).
    logits1 = mlp_evaluator_forward(latent[0], headpose[0], params)
    jax.block_until_ready(logits1)

    assert logits.shape == (steps, batch, n_classes)
    assert logits.dtype == jnp.float32
    assert logits1.shape == (batch, n_classes)
    assert bool(jnp.all(jnp.isfinite(logits)))
    assert bool(jnp.allclose(logits[0], logits1, atol=1e-5, rtol=1e-5))
    print("KERNEL_OK")
</pallas_src>

<mosaic_0001>
module attributes {stable_mosaic.version = 11 : i64} {
  func.func @_mlp_eval_kernel(%arg0: i32, %arg1: memref<1x8x128xf32, #tpu.memory_space<vmem>>, %arg2: memref<1x8x2xf32, #tpu.memory_space<vmem>>, %arg3: memref<128x512xbf16, #tpu.memory_space<vmem>>, %arg4: memref<8x512xf32, #tpu.memory_space<vmem>>, %arg5: memref<1x8x2xf32, #tpu.memory_space<vmem>>) attributes {dimension_semantics = [#tpu.dimension_semantics<parallel>], iteration_bounds = array<i64: 4>, scalar_prefetch = 0 : i64, scratch_operands = 0 : i64, tpu.core_type = #tpu.core_type<tc>, window_params = [{transform_indices = @transform_0, window_bounds = array<i64: 1, 8, 128>}, {transform_indices = @transform_1, window_bounds = array<i64: 1, 8, 2>}, {pipeline_mode = #tpu.pipeline_mode<synchronous>, transform_indices = @transform_2, window_bounds = array<i64: 128, 512>}, {pipeline_mode = #tpu.pipeline_mode<synchronous>, transform_indices = @transform_3, window_bounds = array<i64: 8, 512>}, {transform_indices = @transform_4, window_bounds = array<i64: 1, 8, 2>}]} {
    %c0 = arith.constant 0 : index
    %c0_0 = arith.constant 0 : index
    %c0_1 = arith.constant 0 : index
    %0 = vector.load %arg1[%c0, %c0_0, %c0_1] : memref<1x8x128xf32, #tpu.memory_space<vmem>>, vector<1x8x128xf32>
    %1 = vector.shape_cast %0 : vector<1x8x128xf32> to vector<8x128xf32>
    %c0_2 = arith.constant 0 : index
    %c0_3 = arith.constant 0 : index
    %2 = vector.load %arg3[%c0_2, %c0_3] : memref<128x512xbf16, #tpu.memory_space<vmem>>, vector<128x512xbf16>
    %3 = arith.truncf %1 : vector<8x128xf32> to vector<8x128xbf16>
    %cst = arith.constant dense<0.000000e+00> : vector<8x512xf32>
    %4 = tpu.matmul %3, %2, %cst {dimension_numbers = #tpu.dot_dimension_numbers<[1], [0], [0], [1], [0, 0, 1, 1], [], []>} : vector<8x128xbf16>, vector<128x512xbf16>, vector<8x512xf32> -> vector<8x512xf32>
    %c0_4 = arith.constant 0 : index
    %c0_5 = arith.constant 0 : index
    %c0_6 = arith.constant 0 : index
    %5 = vector.load %arg2[%c0_4, %c0_5, %c0_6] : memref<1x8x2xf32, #tpu.memory_space<vmem>>, vector<1x8x2xf32>
    %6 = vector.shape_cast %5 : vector<1x8x2xf32> to vector<8x2xf32>
    %c0_7 = arith.constant 0 : index
    %c0_8 = arith.constant 0 : index
    %7 = vector.load %arg4[%c0_7, %c0_8] : memref<8x512xf32, #tpu.memory_space<vmem>>, vector<2x512xf32>
    %8 = vector.extract_strided_slice %6 {offsets = [0, 0], sizes = [8, 1], strides = [1, 1]} : vector<8x2xf32> to vector<8x1xf32>
    %9 = vector.extract_strided_slice %7 {offsets = [0, 0], sizes = [1, 512], strides = [1, 1]} : vector<2x512xf32> to vector<1x512xf32>
    %10 = vector.broadcast %8 : vector<8x1xf32> to vector<8x512xf32>
    %11 = vector.broadcast %9 : vector<1x512xf32> to vector<8x512xf32>
    %12 = arith.mulf %10, %11 : vector<8x512xf32>
    %13 = arith.addf %4, %12 : vector<8x512xf32>
    %14 = vector.extract_strided_slice %6 {offsets = [0, 1], sizes = [8, 1], strides = [1, 1]} : vector<8x2xf32> to vector<8x1xf32>
    %15 = vector.extract_strided_slice %7 {offsets = [1, 0], sizes = [1, 512], strides = [1, 1]} : vector<2x512xf32> to vector<1x512xf32>
    %16 = vector.broadcast %14 : vector<8x1xf32> to vector<8x512xf32>
    %17 = vector.broadcast %15 : vector<1x512xf32> to vector<8x512xf32>
    %18 = arith.mulf %16, %17 : vector<8x512xf32>
    %19 = arith.addf %13, %18 : vector<8x512xf32>
    %c4 = arith.constant 4 : index
    %c0_9 = arith.constant 0 : index
    %20 = vector.load %arg4[%c4, %c0_9] : memref<8x512xf32, #tpu.memory_space<vmem>>, vector<1x512xf32>
    %c5 = arith.constant 5 : index
    %c0_10 = arith.constant 0 : index
    %21 = vector.load %arg4[%c5, %c0_10] : memref<8x512xf32, #tpu.memory_space<vmem>>, vector<1x512xf32>
    %cst_11 = arith.constant dense<0.000000e+00> : vector<512xf32>
    %22 = vector.multi_reduction <add>, %19, %cst_11 [0] : vector<8x512xf32> to vector<512xf32>
    %23 = vector.shape_cast %22 : vector<512xf32> to vector<1x512xf32>
    %cst_12 = arith.constant 8.000000e+00 : f32
    %24 = vector.broadcast %cst_12 : f32 to vector<1x512xf32>
    %25 = arith.divf %23, %24 : vector<1x512xf32>
    %26 = vector.broadcast %25 : vector<1x512xf32> to vector<8x512xf32>
    %27 = arith.subf %19, %26 : vector<8x512xf32>
    %28 = vector.broadcast %25 : vector<1x512xf32> to vector<8x512xf32>
    %29 = arith.subf %19, %28 : vector<8x512xf32>
    %30 = arith.mulf %27, %29 : vector<8x512xf32>
    %cst_13 = arith.constant dense<0.000000e+00> : vector<512xf32>
    %31 = vector.multi_reduction <add>, %30, %cst_13 [0] : vector<8x512xf32> to vector<512xf32>
    %32 = vector.shape_cast %31 : vector<512xf32> to vector<1x512xf32>
    %cst_14 = arith.constant 8.000000e+00 : f32
    %33 = vector.broadcast %cst_14 : f32 to vector<1x512xf32>
    %34 = arith.divf %32, %33 : vector<1x512xf32>
    %cst_15 = arith.constant 9.99999974E-6 : f32
    %35 = vector.broadcast %cst_15 : f32 to vector<1x512xf32>
    %36 = arith.addf %34, %35 : vector<1x512xf32>
    %37 = math.rsqrt %36 : vector<1x512xf32>
    %38 = arith.mulf %20, %37 : vector<1x512xf32>
    %39 = arith.mulf %25, %38 : vector<1x512xf32>
    %40 = arith.subf %21, %39 : vector<1x512xf32>
    %41 = vector.broadcast %38 : vector<1x512xf32> to vector<8x512xf32>
    %42 = arith.mulf %19, %41 : vector<8x512xf32>
    %43 = vector.broadcast %40 : vector<1x512xf32> to vector<8x512xf32>
    %44 = arith.addf %42, %43 : vector<8x512xf32>
    %cst_16 = arith.constant 5.000000e-01 : f32
    %45 = vector.broadcast %cst_16 : f32 to vector<8x512xf32>
    %46 = arith.mulf %45, %44 : vector<8x512xf32>
    %cst_17 = arith.constant 0.707106769 : f32
    %47 = vector.broadcast %cst_17 : f32 to vector<8x512xf32>
    %48 = arith.mulf %44, %47 : vector<8x512xf32>
    %49 = math.erf %48 : vector<8x512xf32>
    %cst_18 = arith.constant 1.000000e+00 : f32
    %50 = vector.broadcast %cst_18 : f32 to vector<8x512xf32>
    %51 = arith.addf %50, %49 : vector<8x512xf32>
    %52 = arith.mulf %46, %51 : vector<8x512xf32>
    %c2 = arith.constant 2 : index
    %c0_19 = arith.constant 0 : index
    %53 = vector.load %arg4[%c2, %c0_19] : memref<8x512xf32, #tpu.memory_space<vmem>>, vector<2x512xf32>
    %cst_20 = arith.constant dense<0.000000e+00> : vector<8x2xf32>
    %54 = tpu.matmul %52, %53, %cst_20 {dimension_numbers = #tpu.dot_dimension_numbers<[1], [1], [0], [0], [0, 0, 1, 0], [], []>} : vector<8x512xf32>, vector<2x512xf32>, vector<8x2xf32> -> vector<8x2xf32>
    %c6 = arith.constant 6 : index
    %c0_21 = arith.constant 0 : index
    %55 = vector.load %arg4[%c6, %c0_21] : memref<8x512xf32, #tpu.memory_space<vmem>>, vector<1x2xf32>
    %56 = vector.broadcast %55 : vector<1x2xf32> to vector<8x2xf32>
    %57 = arith.addf %54, %56 : vector<8x2xf32>
    %c0_22 = arith.constant 0 : index
    %c0_23 = arith.constant 0 : index
    %c0_24 = arith.constant 0 : index
    %58 = vector.load %arg5[%c0_22, %c0_23, %c0_24] : memref<1x8x2xf32, #tpu.memory_space<vmem>>, vector<1x8x2xf32>
    %59 = vector.shape_cast %58 : vector<1x8x2xf32> to vector<8x2xf32>
    %60 = vector.shape_cast %57 : vector<8x2xf32> to vector<1x8x2xf32>
    tpu.vector_store %arg5[%c0_22, %c0_23, %c0_24], %60 {strides = array<i32>} : memref<1x8x2xf32, #tpu.memory_space<vmem>>, vector<1x8x2xf32>,
    return
  }
  func.func @transform_0(%arg0: i32) -> (i32, i32, i32) {
    %c0_i32 = arith.constant 0 : i32
    %c0_i32_0 = arith.constant 0 : i32
    %c0_i32_1 = arith.constant 0 : i32
    return %arg0, %c0_i32, %c0_i32_0 : i32, i32, i32
  }
  func.func @transform_1(%arg0: i32) -> (i32, i32, i32) {
    %c0_i32 = arith.constant 0 : i32
    %c0_i32_0 = arith.constant 0 : i32
    %c0_i32_1 = arith.constant 0 : i32
    return %arg0, %c0_i32, %c0_i32_0 : i32, i32, i32
  }
  func.func @transform_2(%arg0: i32) -> (i32, i32) {
    %c0_i32 = arith.constant 0 : i32
    %c0_i32_0 = arith.constant 0 : i32
    %c0_i32_1 = arith.constant 0 : i32
    return %c0_i32, %c0_i32_0 : i32, i32
  }
  func.func @transform_3(%arg0: i32) -> (i32, i32) {
    %c0_i32 = arith.constant 0 : i32
    %c0_i32_0 = arith.constant 0 : i32
    %c0_i32_1 = arith.constant 0 : i32
    return %c0_i32, %c0_i32_0 : i32, i32
  }
  func.func @transform_4(%arg0: i32) -> (i32, i32, i32) {
    %c0_i32 = arith.constant 0 : i32
    %c0_i32_0 = arith.constant 0 : i32
    %c0_i32_1 = arith.constant 0 : i32
    return %arg0, %c0_i32, %c0_i32_0 : i32, i32, i32
  }
}

</mosaic_0001>

<llo_original>
// kernel: tpu_custom_call.1
$region0: #{tpu_custom_call.1}
  #allocation0 [shape = 'u32[]', space=smem, size = 0x4, offset = 0x4, fixed_abs, tag = 'smem constant byte address 0x4 - core index']
  #allocation1 [shape = 'u32[72,128]{1,0:T(1,128)}', space=vmem, size = 0x9000, scoped, tag = 'internal scratch']
  %s0 = inlined_call_operand.vmem [shape: f32[4,8,128], index: 0, kind: input, shape index: {}]
  %s1 = inlined_call_operand.vmem [shape: f32[4,8,2], index: 1, kind: input, shape index: {}]
  %s2 = inlined_call_operand.hbm [shape: bf16[128,512], index: 2, kind: input, shape index: {}]
  %s3 = inlined_call_operand.hbm [shape: f32[8,512], index: 3, kind: input, shape index: {}]
  %s4 = inlined_call_operand.vmem [shape: f32[4,8,2], index: 4, kind: output, shape index: {}]
  %s5 = sld [smem:[#allocation0]]
  $region57: #{tpu_custom_call.1} parent=0
    _
  %s7 = ssub.s32 1, %s5
  %s8 = scalar_select 0, %s7, %s5
  $region1: #{tpu_custom_call.1} parent=0
    #allocation2 [shape = 'u8[131072]{0}', space=vmem, size = 0x20000, scoped, tag = 'input window, operand 2, single buffered']
    #allocation3 [shape = 's32[2]{0}', space=sflag, size = 0x8, scoped, tag = 'scoped memory for tpu_custom_call.1']
    #allocation4 [shape = 'u8[16384]{0}', space=vmem, size = 0x4000, scoped, tag = 'input window, operand 3, single buffered']
    #allocation5 [shape = 's32[1]{0}', space=sflag, size = 0x4, scoped, tag = 'scoped memory for tpu_custom_call.1']
    %9 = vsyncpa [#allocation3], 0
    %10 = vsyncpa [#allocation5], 0
    loop: start=0, step=1, limit=6
    $region2: #{tpu_custom_call.1} parent=1 // loop_pre_header
      _
    $region3: #{tpu_custom_call.1} parent=1 // loop_header
      %s12 = sphi 0, %s16
      %p13 = scmp.ge.s32.totalorder %s12, 6
      %s22 = sphi 0, %s24
      %s25 = sphi 0, %s22
      %s26 = sphi 0, %s25
      %s42 = sphi 0, %s26
      %s48 = sphi 0, %s50
      %s51 = sphi 0, %s48
      %s52 = sphi 0, %s51
      %s68 = sphi 0, %s52
      %s72 = sphi 0, %s72
      %s74 = sphi 0, %s72
      %s75 = sphi 0, %s74
      %s89 = sphi 0, %s75
      %s93 = sphi 0, %s93
      %s95 = sphi 0, %s93
      %s96 = sphi 0, %s95
      %s110 = sphi 0, %s96
      %s116 = sphi 0, %s118
      %s119 = sphi 0, %s116
      %s120 = sphi 0, %s119
      %s136 = sphi 0, %s120
    $region4: #{tpu_custom_call.1} parent=1 // loop_header_branch
      %15 = sbr.rel (%p13) target = $region8
    $region5: #{tpu_custom_call.1} parent=1 // loop_body
      %s17 = ssub.s32 %s12, 1
      %s18 = ssub.s32 %s12, 2
      %s19 = sadd.s32 %s12, 1
      %s20 = ssub.s32 %s12, %s19
      %p21 = scmp.eq.s32.totalorder %s20, 0
      %s23 = sadd.s32 %s22, 1
      %s24 = scalar_select %p21, %s22, %s23
      %p27 = pneg %p21
      %p28 = scmp.eq.s32.totalorder %s12, 3
      %p29 = por %p27, %p28
      %p30 = scmp.ne.s32.totalorder %s22, %s25
      %p31 = scmp.eq.s32.totalorder %s12, 0
      %p32 = por %p30, %p31
      %p33 = scmp.ne.s32.totalorder %s22, %s25
      %p34 = scmp.eq.s32.totalorder %s17, 3
      %p35 = por %p33, %p34
      %p36 = scmp.ne.s32.totalorder %s25, %s26
      %p37 = scmp.eq.s32.totalorder %s17, 0
      %p38 = por %p36, %p37
      %p39 = scmp.ne.s32.totalorder %s25, %s26
      %p40 = scmp.eq.s32.totalorder %s18, 3
      %p41 = por %p39, %p40
      %p43 = scmp.ne.s32.totalorder %s26, %s42
      %p44 = scmp.eq.s32.totalorder %s18, 0
      %p45 = por %p43, %p44
      %s46 = ssub.s32 %s12, %s19
      %p47 = scmp.eq.s32.totalorder %s46, 0
      %s49 = sadd.s32 %s48, 1
      %s50 = scalar_select %p47, %s48, %s49
      %p53 = pneg %p47
      %p54 = scmp.eq.s32.totalorder %s12, 3
      %p55 = por %p53, %p54
      %p56 = scmp.ne.s32.totalorder %s48, %s51
      %p57 = scmp.eq.s32.totalorder %s12, 0
      %p58 = por %p56, %p57
      %p59 = scmp.ne.s32.totalorder %s48, %s51
      %p60 = scmp.eq.s32.totalorder %s17, 3
      %p61 = por %p59, %p60
      %p62 = scmp.ne.s32.totalorder %s51, %s52
      %p63 = scmp.eq.s32.totalorder %s17, 0
      %p64 = por %p62, %p63
      %p65 = scmp.ne.s32.totalorder %s51, %s52
      %p66 = scmp.eq.s32.totalorder %s18, 3
      %p67 = por %p65, %p66
      %p69 = scmp.ne.s32.totalorder %s52, %s68
      %p70 = scmp.eq.s32.totalorder %s18, 0
      %p71 = por %p69, %p70
      %s73 = sadd.s32 %s72, 1
      %p76 = scmp.eq.s32.totalorder %s12, 3
      %p77 = scmp.ne.s32.totalorder %s72, %s74
      %p78 = scmp.eq.s32.totalorder %s12, 0
      %p79 = por %p77, %p78
      %p80 = scmp.ne.s32.totalorder %s72, %s74
      %p81 = scmp.eq.s32.totalorder %s17, 3
      %p82 = por %p80, %p81
      %p83 = scmp.ne.s32.totalorder %s74, %s75
      %p84 = scmp.eq.s32.totalorder %s17, 0
      %p85 = por %p83, %p84
      %p86 = scmp.ne.s32.totalorder %s74, %s75
      %p87 = scmp.eq.s32.totalorder %s18, 3
      %p88 = por %p86, %p87
      %p90 = scmp.ne.s32.totalorder %s75, %s89
      %p91 = scmp.eq.s32.totalorder %s18, 0
      %p92 = por %p90, %p91
      %s94 = sadd.s32 %s93, 1
      %p97 = scmp.eq.s32.totalorder %s12, 3
      %p98 = scmp.ne.s32.totalorder %s93, %s95
      %p99 = scmp.eq.s32.totalorder %s12, 0
      %p100 = por %p98, %p99
      %p101 = scmp.ne.s32.totalorder %s93, %s95
      %p102 = scmp.eq.s32.totalorder %s17, 3
      %p103 = por %p101, %p102
      %p104 = scmp.ne.s32.totalorder %s95, %s96
      %p105 = scmp.eq.s32.totalorder %s17, 0
      %p106 = por %p104, %p105
      %p107 = scmp.ne.s32.totalorder %s95, %s96
      %p108 = scmp.eq.s32.totalorder %s18, 3
      %p109 = por %p107, %p108
      %p111 = scmp.ne.s32.totalorder %s96, %s110
      %p112 = scmp.eq.s32.totalorder %s18, 0
      %p113 = por %p111, %p112
      %s114 = ssub.s32 %s12, %s19
      %p115 = scmp.eq.s32.totalorder %s114, 0
      %s117 = sadd.s32 %s116, 1
      %s118 = scalar_select %p115, %s116, %s117
      %p121 = pneg %p115
      %p122 = scmp.eq.s32.totalorder %s12, 3
      %p123 = por %p121, %p122
      %p124 = scmp.ne.s32.totalorder %s116, %s119
      %p125 = scmp.eq.s32.totalorder %s12, 0
      %p126 = por %p124, %p125
      %p127 = scmp.ne.s32.totalorder %s116, %s119
      %p128 = scmp.eq.s32.totalorder %s17, 3
      %p129 = por %p127, %p128
      %p130 = scmp.ne.s32.totalorder %s119, %s120
      %p131 = scmp.eq.s32.totalorder %s17, 0
      %p132 = por %p130, %p131
      %p133 = scmp.ne.s32.totalorder %s119, %s120
      %p134 = scmp.eq.s32.totalorder %s18, 3
      %p135 = por %p133, %p134
      %p137 = scmp.ne.s32.totalorder %s120, %s136
      %p138 = scmp.eq.s32.totalorder %s18, 0
      %p139 = por %p137, %p138
      %p140 = scmp.le.s32.totalorder 1, %s12
      %p141 = scmp.lt.s32.totalorder %s12, 5
      %p142 = pnand %p140, %p141
      %p143 = pneg %p142
      // Predicated region
      $region9: #{tpu_custom_call.1} parent=5 // pred_check
        _
      $region10: #{tpu_custom_call.1} parent=5 // pred_check_branch
        %145 = sbr.rel (%p142) target = $region12
      $region11: #{tpu_custom_call.1} parent=5 // pred_region
        %s146 = ssub.s32 %s12, 1
        // Predicated region
        $region13: #{tpu_custom_call.1} parent=11 // pred_check
          %p147 = pneg %p85
        $region14: #{tpu_custom_call.1} parent=11 // pred_check_branch
          %149 = sbr.rel (%p147) target = $region16
        $region15: #{tpu_custom_call.1} parent=11 // pred_region
          %151 = vsyncadd [#allocation3], 0
          %s152 = sshll.u32 %s2, 4
          %s153 = int_to_ptr.hbm [resolvable:$true] %s152
          %s154 = sshll.u32 [#allocation2], 4
          %s155 = int_to_ptr.vmem [resolvable:$true] %s154
          %160 = dma.hbm_to_vmem [thread:$0]  %s153, 4096, %s155, [#allocation3], 256, 256, 16
        $region16: #{tpu_custom_call.1} parent=11 // pred_fallthru
          _
        // Predicated region
        $region17: #{tpu_custom_call.1} parent=11 // pred_check
          %p161 = pneg %p106
        $region18: #{tpu_custom_call.1} parent=11 // pred_check_branch
          %163 = sbr.rel (%p161) target = $region20
        $region19: #{tpu_custom_call.1} parent=11 // pred_region
          %165 = vsyncadd [#allocation5], 0
          %s167 = sshll.u32 %s3, 4
          %s168 = int_to_ptr.hbm [resolvable:$true] %s167
          %s169 = sshll.u32 [#allocation4], 4
          %s170 = int_to_ptr.vmem [resolvable:$true] %s169
          %172 = dma.hbm_to_vmem [thread:$0]  %s168, 512, %s170, [#allocation5]
        $region20: #{tpu_custom_call.1} parent=11 // pred_fallthru
          _
      $region12: #{tpu_custom_call.1} parent=5 // pred_fallthru
        _
      %p173 = scmp.lt.s32.totalorder %s12, 4
      // Predicated region
      $region21: #{tpu_custom_call.1} parent=5 // pred_check
        %p174 = pneg %p173
      $region22: #{tpu_custom_call.1} parent=5 // pred_check_branch
        %176 = sbr.rel (%p174) target = $region24
      $region23: #{tpu_custom_call.1} parent=5 // pred_region
        // Predicated region
        $region25: #{tpu_custom_call.1} parent=23 // pred_check
          %p177 = pneg %p32
        $region26: #{tpu_custom_call.1} parent=23 // pred_check_branch
          %179 = sbr.rel (%p177) target = $region28
        $region27: #{tpu_custom_call.1} parent=23 // pred_region
          %p180 = scmp.lt.s32.totalorder %s12, 3
          %s181 = scalar_select %p180, %s12, 3
          %s182 = smul.addr %s181, 8
          %s183 = scalar_lea.vmem %s0, %s182
        $region28: #{tpu_custom_call.1} parent=23 // pred_fallthru
          _
        // Predicated region
        $region29: #{tpu_custom_call.1} parent=23 // pred_check
          %p184 = pneg %p58
        $region30: #{tpu_custom_call.1} parent=23 // pred_check_branch
          %186 = sbr.rel (%p184) target = $region32
        $region31: #{tpu_custom_call.1} parent=23 // pred_region
          %p187 = scmp.lt.s32.totalorder %s12, 3
          %s188 = scalar_select %p187, %s12, 3
          %s189 = smul.addr %s188, 8
          %s190 = scalar_lea.vmem %s1, %s189
        $region32: #{tpu_custom_call.1} parent=23 // pred_fallthru
          _
      $region24: #{tpu_custom_call.1} parent=5 // pred_fallthru
        _
      %p191 = scmp.le.s32.totalorder 1, %s12
      %p192 = scmp.lt.s32.totalorder %s12, 5
      %p193 = pnand %p191, %p192
      %p194 = pneg %p193
      // Predicated region
      $region33: #{tpu_custom_call.1} parent=5 // pred_check
        _
      $region34: #{tpu_custom_call.1} parent=5 // pred_check_branch
        %196 = sbr.rel (%p193) target = $region36
      $region35: #{tpu_custom_call.1} parent=5 // pred_region
        %s197 = ssub.s32 %s12, 1
        // Predicated region
        $region37: #{tpu_custom_call.1} parent=35 // pred_check
          %p198 = pneg %p85
        $region38: #{tpu_custom_call.1} parent=35 // pred_check_branch
          %200 = sbr.rel (%p198) target = $region40
        $region39: #{tpu_custom_call.1} parent=35 // pred_region
          %202 = dma.done [#allocation3], 4096
        $region40: #{tpu_custom_call.1} parent=35 // pred_fallthru
          _
        // Predicated region
        $region41: #{tpu_custom_call.1} parent=35 // pred_check
          %p203 = pneg %p106
        $region42: #{tpu_custom_call.1} parent=35 // pred_check_branch
          %205 = sbr.rel (%p203) target = $region44
        $region43: #{tpu_custom_call.1} parent=35 // pred_region
          %207 = dma.done [#allocation5], 512
        $region44: #{tpu_custom_call.1} parent=35 // pred_fallthru
          _
        %p208 = scmp.lt.s32.totalorder %s17, 3
        %s209 = scalar_select %p208, %s17, 3
        %s210 = smul.addr %s209, 8
        %s211 = scalar_lea.vmem %s0, %s210
        %p212 = pneg %p38
        %p213 = pneg %p35
        %p214 = scmp.lt.s32.totalorder %s17, 3
        %s215 = scalar_select %p214, %s17, 3
        %s216 = smul.addr %s215, 8
        %s217 = scalar_lea.vmem %s1, %s216
        %p218 = pneg %p64
        %p219 = pneg %p61
        %p220 = pneg %p85
        %p221 = pneg %p82
        %p222 = pneg %p106
        %p223 = pneg %p103
        %p224 = pneg %p132
        %p225 = pneg %p129
        %p226 = scmp.lt.s32.totalorder %s17, 3
        %s227 = scalar_select %p226, %s17, 3
        %s228 = smul.addr %s227, 8
        %s229 = scalar_lea.vmem %s4, %s228
        %p230 = scmp.lt.s32.totalorder %s17, 3
        %s231 = scalar_select %p230, %s17, 3
        %s232 = smul.addr %s231, 8
        %s233 = scalar_lea.vmem %s0, %s232
        %p234 = scmp.lt.s32.totalorder %s17, 3
        %s235 = scalar_select %p234, %s17, 3
        %s236 = smul.addr %s235, 8
        %s237 = scalar_lea.vmem %s1, %s236
        %p238 = scmp.lt.s32.totalorder %s17, 3
        %s239 = scalar_select %p238, %s17, 3
        %s240 = smul.addr %s239, 8
        %s241 = scalar_lea.vmem %s4, %s240
        %v242 = vld [vmem:[%s233] sm:$0xff]
        %v243 = vld [vmem:[#allocation2] sm:$0xff]
        %v244 = vld [vmem:[#allocation2 + $0x8] sm:$0xff]
        %v245 = vld [vmem:[#allocation2 + $0x10] sm:$0xff]
        %v246 = vld [vmem:[#allocation2 + $0x18] sm:$0xff]
        %v247 = vld [vmem:[#allocation2 + $0x20] sm:$0xff]
        %v248 = vld [vmem:[#allocation2 + $0x28] sm:$0xff]
        %v249 = vld [vmem:[#allocation2 + $0x30] sm:$0xff]
        %v250 = vld [vmem:[#allocation2 + $0x38] sm:$0xff]
        %v251 = vld [vmem:[#allocation2 + $0x40] sm:$0xff]
        %v252 = vld [vmem:[#allocation2 + $0x48] sm:$0xff]
        %v253 = vld [vmem:[#allocation2 + $0x50] sm:$0xff]
        %v254 = vld [vmem:[#allocation2 + $0x58] sm:$0xff]
        %v255 = vld [vmem:[#allocation2 + $0x60] sm:$0xff]
        %v256 = vld [vmem:[#allocation2 + $0x68] sm:$0xff]
        %v257 = vld [vmem:[#allocation2 + $0x70] sm:$0xff]
        %v258 = vld [vmem:[#allocation2 + $0x78] sm:$0xff]
        %v259 = vld [vmem:[#allocation2 + $0x80] sm:$0xff]
        %v260 = vld [vmem:[#allocation2 + $0x88] sm:$0xff]
        %v261 = vld [vmem:[#allocation2 + $0x90] sm:$0xff]
        %v262 = vld [vmem:[#allocation2 + $0x98] sm:$0xff]
        %v263 = vld [vmem:[#allocation2 + $0xa0] sm:$0xff]
        %v264 = vld [vmem:[#allocation2 + $0xa8] sm:$0xff]
        %v265 = vld [vmem:[#allocation2 + $0xb0] sm:$0xff]
        %v266 = vld [vmem:[#allocation2 + $0xb8] sm:$0xff]
        %v267 = vld [vmem:[#allocation2 + $0xc0] sm:$0xff]
        %v268 = vld [vmem:[#allocation2 + $0xc8] sm:$0xff]
        %v269 = vld [vmem:[#allocation2 + $0xd0] sm:$0xff]
        %v270 = vld [vmem:[#allocation2 + $0xd8] sm:$0xff]
        %v271 = vld [vmem:[#allocation2 + $0xe0] sm:$0xff]
        %v272 = vld [vmem:[#allocation2 + $0xe8] sm:$0xff]
        %v273 = vld [vmem:[#allocation2 + $0xf0] sm:$0xff]
        %v274 = vld [vmem:[#allocation2 + $0xf8] sm:$0xff]
        %v275 = vpack.c.bf16 %v242, %v242
        %v276 = vld [vmem:[%s237] sm:$0xff]
        %v277 = vld [vmem:[#allocation4] sm:$0x3]
        %v278 = vld [vmem:[#allocation4 + $0x8] sm:$0x3]
        %v279 = vld [vmem:[#allocation4 + $0x10] sm:$0x3]
        %v280 = vld [vmem:[#allocation4 + $0x18] sm:$0x3]
        %282 = vset.pattern.permute.xlu0 0
        %283 = vperm.xlu0 %282, %v276
        %v284 = vpop.permute.xlu0 %283
        %v286 = vperm.slane %v277, 0
        %v287 = vperm.slane %v278, 0
        %v288 = vperm.slane %v279, 0
        %v289 = vperm.slane %v280, 0
        %v290 = vmul.f32 %v284, %v286
        %v291 = vmul.f32 %v284, %v287
        %v292 = vmul.f32 %v284, %v288
        %v293 = vmul.f32 %v284, %v289
        %v326 = vunpack.c.l.b16 %v243
        %v327 = vunpack.c.h.b16 %v243
        %v328 = vunpack.c.l.b16 %v244
        %v329 = vunpack.c.h.b16 %v244
        %v330 = vunpack.c.l.b16 %v245
        %v331 = vunpack.c.h.b16 %v245
        %v332 = vunpack.c.l.b16 %v246
        %v333 = vunpack.c.h.b16 %v246
        %v334 = vunpack.c.l.b16 %v247
        %v335 = vunpack.c.h.b16 %v247
        %v336 = vunpack.c.l.b16 %v248
        %v337 = vunpack.c.h.b16 %v248
        %v338 = vunpack.c.l.b16 %v249
        %v339 = vunpack.c.h.b16 %v249
        %v340 = vunpack.c.l.b16 %v250
        %v341 = vunpack.c.h.b16 %v250
        %v342 = vunpack.c.l.b16 %v251
        %v343 = vunpack.c.h.b16 %v251
        %v344 = vunpack.c.l.b16 %v252
        %v345 = vunpack.c.h.b16 %v252
        %v346 = vunpack.c.l.b16 %v253
        %v347 = vunpack.c.h.b16 %v253
        %v348 = vunpack.c.l.b16 %v254
        %v349 = vunpack.c.h.b16 %v254
        %v350 = vunpack.c.l.b16 %v255
        %v351 = vunpack.c.h.b16 %v255
        %v352 = vunpack.c.l.b16 %v256
        %v353 = vunpack.c.h.b16 %v256
        %v354 = vunpack.c.l.b16 %v257
        %v355 = vunpack.c.h.b16 %v257
        %v356 = vunpack.c.l.b16 %v258
        %v357 = vunpack.c.h.b16 %v258
        %v358 = vunpack.c.l.b16 %v259
        %v359 = vunpack.c.h.b16 %v259
        %v360 = vunpack.c.l.b16 %v260
        %v361 = vunpack.c.h.b16 %v260
        %v362 = vunpack.c.l.b16 %v261
        %v363 = vunpack.c.h.b16 %v261
        %v364 = vunpack.c.l.b16 %v262
        %v365 = vunpack.c.h.b16 %v262
        %v366 = vunpack.c.l.b16 %v263
        %v367 = vunpack.c.h.b16 %v263
        %v368 = vunpack.c.l.b16 %v264
        %v369 = vunpack.c.h.b16 %v264
        %v370 = vunpack.c.l.b16 %v265
        %v371 = vunpack.c.h.b16 %v265
        %v372 = vunpack.c.l.b16 %v266
        %v373 = vunpack.c.h.b16 %v266
        %v374 = vunpack.c.l.b16 %v267
        %v375 = vunpack.c.h.b16 %v267
        %v376 = vunpack.c.l.b16 %v268
        %v377 = vunpack.c.h.b16 %v268
        %v378 = vunpack.c.l.b16 %v269
        %v379 = vunpack.c.h.b16 %v269
        %v380 = vunpack.c.l.b16 %v270
        %v381 = vunpack.c.h.b16 %v270
        %v382 = vunpack.c.l.b16 %v271
        %v383 = vunpack.c.h.b16 %v271
        %v384 = vunpack.c.l.b16 %v272
        %v385 = vunpack.c.h.b16 %v272
        %v386 = vunpack.c.l.b16 %v273
        %v387 = vunpack.c.h.b16 %v273
        %v388 = vunpack.c.l.b16 %v274
        %v389 = vunpack.c.h.b16 %v274
        %v390 = vpack.c.b16 %v330, %v326
        %v391 = vpack.c.b16 %v331, %v327
        %v392 = vpack.c.b16 %v332, %v328
        %v393 = vpack.c.b16 %v333, %v329
        %v394 = vpack.c.b16 %v338, %v334
        %v395 = vpack.c.b16 %v339, %v335
        %v396 = vpack.c.b16 %v340, %v336
        %v397 = vpack.c.b16 %v341, %v337
        %v398 = vpack.c.b16 %v346, %v342
        %v399 = vpack.c.b16 %v347, %v343
        %v400 = vpack.c.b16 %v348, %v344
        %v401 = vpack.c.b16 %v349, %v345
        %v402 = vpack.c.b16 %v354, %v350
        %v403 = vpack.c.b16 %v355, %v351
        %v404 = vpack.c.b16 %v356, %v352
        %v405 = vpack.c.b16 %v357, %v353
        %v406 = vpack.c.b16 %v362, %v358
        %v407 = vpack.c.b16 %v363, %v359
        %v408 = vpack.c.b16 %v364, %v360
        %v409 = vpack.c.b16 %v365, %v361
        %v410 = vpack.c.b16 %v370, %v366
        %v411 = vpack.c.b16 %v371, %v367
        %v412 = vpack.c.b16 %v372, %v368
        %v413 = vpack.c.b16 %v373, %v369
        %v414 = vpack.c.b16 %v378, %v374
        %v415 = vpack.c.b16 %v379, %v375
        %v416 = vpack.c.b16 %v380, %v376
        %v417 = vpack.c.b16 %v381, %v377
        %v418 = vpack.c.b16 %v386, %v382
        %v419 = vpack.c.b16 %v387, %v383
        %v420 = vpack.c.b16 %v388, %v384
        %v421 = vpack.c.b16 %v389, %v385
        %454 = vmatpush.bf16.msra.mxu0 %v418
        %455 = vmatpush.bf16.msra.mxu0 %v414
        %456 = vmatpush.bf16.msra.mxu0 %v410
        %457 = vmatpush.bf16.msra.mxu0 %v406
        %458 = vmatpush.bf16.msra.mxu0 %v402
        %459 = vmatpush.bf16.msra.mxu0 %v398
        %460 = vmatpush.bf16.msra.mxu0 %v394
        %461 = vmatpush.bf16.msra.mxu0 %v390
        %462 = vmatmul.bf16.gmra.mxu0 %v275
        %v463 = vpop.f32.mrf.mxu0
        %v464 = vadd.f32 %v290, %v463
        %v465 = vpop.f32.mrf.mxu0
        %466 = vdwg.mxu0
        %467 = vmatpush.bf16.msra.mxu0 %v419
        %468 = vmatpush.bf16.msra.mxu0 %v415
        %469 = vmatpush.bf16.msra.mxu0 %v411
        %470 = vmatpush.bf16.msra.mxu0 %v407
        %471 = vmatpush.bf16.msra.mxu0 %v403
        %472 = vmatpush.bf16.msra.mxu0 %v399
        %473 = vmatpush.bf16.msra.mxu0 %v395
        %474 = vmatpush.bf16.msra.mxu0 %v391
        %475 = vmatmul.bf16.gmra.mxu0 %v275
        %v476 = vpop.f32.mrf.mxu0
        %v477 = vadd.f32 %v291, %v476
        %v478 = vpop.f32.mrf.mxu0
        %479 = vdwg.mxu0
        %480 = vmatpush.bf16.msra.mxu0 %v420
        %481 = vmatpush.bf16.msra.mxu0 %v416
        %482 = vmatpush.bf16.msra.mxu0 %v412
        %483 = vmatpush.bf16.msra.mxu0 %v408
        %484 = vmatpush.bf16.msra.mxu0 %v404
        %485 = vmatpush.bf16.msra.mxu0 %v400
        %486 = vmatpush.bf16.msra.mxu0 %v396
        %487 = vmatpush.bf16.msra.mxu0 %v392
        %488 = vmatmul.bf16.gmra.mxu0 %v275
        %v489 = vpop.f32.mrf.mxu0
        %v490 = vadd.f32 %v292, %v489
        %v491 = vpop.f32.mrf.mxu0
        %492 = vdwg.mxu0
        %493 = vmatpush.bf16.msra.mxu0 %v421
        %494 = vmatpush.bf16.msra.mxu0 %v417
        %495 = vmatpush.bf16.msra.mxu0 %v413
        %496 = vmatpush.bf16.msra.mxu0 %v409
        %497 = vmatpush.bf16.msra.mxu0 %v405
        %498 = vmatpush.bf16.msra.mxu0 %v401
        %499 = vmatpush.bf16.msra.mxu0 %v397
        %500 = vmatpush.bf16.msra.mxu0 %v393
        %501 = vmatmul.bf16.gmra.mxu0 %v275
        %v502 = vpop.f32.mrf.mxu0
        %v503 = vadd.f32 %v293, %v502
        %v504 = vpop.f32.mrf.mxu0
        %505 = vdwg.mxu0
        %506 = vset.pattern.permute.xlu0 1
        %507 = vperm.xlu0 %506, %v276
        %v508 = vpop.permute.xlu0 %507
        %v510 = vperm.slane %v277, 1
        %v511 = vperm.slane %v278, 1
        %v512 = vperm.slane %v279, 1
        %v513 = vperm.slane %v280, 1
        %v514 = vmul.f32 %v508, %v510
        %v515 = vmul.f32 %v508, %v511
        %v516 = vmul.f32 %v508, %v512
        %v517 = vmul.f32 %v508, %v513
        %v518 = vadd.f32 %v464, %v514
        %v519 = vadd.f32 %v477, %v515
        %v520 = vadd.f32 %v490, %v516
        %v521 = vadd.f32 %v503, %v517
        %s522 = scalar_lea.vmem [#allocation4], 4
        %v523 = vld [vmem:[%s522] ss:$8 sm:$0xf]
        %s524 = scalar_lea.vmem [#allocation4], 5
        %v525 = vld [vmem:[%s524] ss:$8 sm:$0xf]
        %v526 = vrot.slane %v518, 4
        %v527 = vadd.f32 %v518, %v526
        %v528 = vrot.slane %v527, 2
        %v529 = vadd.f32 %v527, %v528
        %v530 = vrot.slane %v529, 1
        %v531 = vadd.f32 %v529, %v530
        %v532 = vrot.slane %v519, 4
        %v533 = vadd.f32 %v519, %v532
        %v534 = vrot.slane %v533, 2
        %v535 = vadd.f32 %v533, %v534
        %v536 = vrot.slane %v535, 1
        %v537 = vadd.f32 %v535, %v536
        %v538 = vrot.slane %v520, 4
        %v539 = vadd.f32 %v520, %v538
        %v540 = vrot.slane %v539, 2
        %v541 = vadd.f32 %v539, %v540
        %v542 = vrot.slane %v541, 1
        %v543 = vadd.f32 %v541, %v542
        %v544 = vrot.slane %v521, 4
        %v545 = vadd.f32 %v521, %v544
        %v546 = vrot.slane %v545, 2
        %v547 = vadd.f32 %v545, %v546
        %v548 = vrot.slane %v547, 1
        %v549 = vadd.f32 %v547, %v548
        %v550 = vrcp.pop 8.0
        %v551 = vmul.f32 8.0, %v550
        %v552 = vsub.f32 1.0, %v551
        %v553 = vmul.f32 %v550, %v552
        %v554 = vadd.f32 %v550, %v553
        %vm555 = vweird.f32 %v550
        %v556 = vsel %vm555, %v550, %v554
        %v557 = vmul.f32 %v531, %v556
        %v558 = vmul.f32 %v537, %v556
        %v559 = vmul.f32 %v543, %v556
        %v560 = vmul.f32 %v549, %v556
        %v561 = vsub.f32 %v518, %v557
        %v562 = vsub.f32 %v519, %v558
        %v563 = vsub.f32 %v520, %v559
        %v564 = vsub.f32 %v521, %v560
        %v565 = vmul.f32 %v561, %v561
        %v566 = vmul.f32 %v562, %v562
        %v567 = vmul.f32 %v563, %v563
        %v568 = vmul.f32 %v564, %v564
        %v569 = vrot.slane %v565, 4
        %v570 = vadd.f32 %v565, %v569
        %v571 = vrot.slane %v570, 2
        %v572 = vadd.f32 %v570, %v571
        %v573 = vrot.slane %v572, 1
        %v574 = vadd.f32 %v572, %v573
        %v575 = vrot.slane %v566, 4
        %v576 = vadd.f32 %v566, %v575
        %v577 = vrot.slane %v576, 2
        %v578 = vadd.f32 %v576, %v577
        %v579 = vrot.slane %v578, 1
        %v580 = vadd.f32 %v578, %v579
        %v581 = vrot.slane %v567, 4
        %v582 = vadd.f32 %v567, %v581
        %v583 = vrot.slane %v582, 2
        %v584 = vadd.f32 %v582, %v583
        %v585 = vrot.slane %v584, 1
        %v586 = vadd.f32 %v584, %v585
        %v587 = vrot.slane %v568, 4
        %v588 = vadd.f32 %v568, %v587
        %v589 = vrot.slane %v588, 2
        %v590 = vadd.f32 %v588, %v589
        %v591 = vrot.slane %v590, 1
        %v592 = vadd.f32 %v590, %v591
        %v593 = vmul.f32 %v574, %v556
        %v594 = vmul.f32 %v580, %v556
        %v595 = vmul.f32 %v586, %v556
        %v596 = vmul.f32 %v592, %v556
        %v597 = vadd.f32 %v593, 1e-05
        %v598 = vadd.f32 %v594, 1e-05
        %v599 = vadd.f32 %v595, 1e-05
        %v600 = vadd.f32 %v596, 1e-05
        %v601 = vrsqrt.pop %v597
        %v602 = vmul.f32 %v601, %v597
        %v603 = vmul.f32 %v602, %v601
        %v604 = vmul.f32 0.5, %v603
        %v605 = vsub.f32 1.5, %v604
        %v606 = vmul.f32 %v601, %v605
        %vm607 = vweird.f32 %v597
        %vm608 = vweird.f32 %v601
        %vm609 = vmor %vm607, %vm608
        %v610 = vsel %vm609, %v601, %v606
        %v611 = vrsqrt.pop %v598
        %v612 = vmul.f32 %v611, %v598
        %v613 = vmul.f32 %v612, %v611
        %v614 = vmul.f32 0.5, %v613
        %v615 = vsub.f32 1.5, %v614
        %v616 = vmul.f32 %v611, %v615
        %vm617 = vweird.f32 %v598
        %vm618 = vweird.f32 %v611
        %vm619 = vmor %vm617, %vm618
        %v620 = vsel %vm619, %v611, %v616
        %v621 = vrsqrt.pop %v599
        %v622 = vmul.f32 %v621, %v599
        %v623 = vmul.f32 %v622, %v621
        %v624 = vmul.f32 0.5, %v623
        %v625 = vsub.f32 1.5, %v624
        %v626 = vmul.f32 %v621, %v625
        %vm627 = vweird.f32 %v599
        %vm628 = vweird.f32 %v621
        %vm629 = vmor %vm627, %vm628
        %v630 = vsel %vm629, %v621, %v626
        %v631 = vrsqrt.pop %v600
        %v632 = vmul.f32 %v631, %v600
        %v633 = vmul.f32 %v632, %v631
        %v634 = vmul.f32 0.5, %v633
        %v635 = vsub.f32 1.5, %v634
        %v636 = vmul.f32 %v631, %v635
        %vm637 = vweird.f32 %v600
        %vm638 = vweird.f32 %v631
        %vm639 = vmor %vm637, %vm638
        %v640 = vsel %vm639, %v631, %v636
        %v645 = vrot.slane %v620, 7
        %v646 = vrot.slane %v630, 6
        %v647 = vrot.slane %v640, 5
        %vm648 = vcmask 1040384
        %v649 = vsel %vm648, %v610, %v645
        %vm650 = vcmask 1042434
        %v651 = vsel %vm650, %v646, %v647
        %vm652 = vcmask 1041408
        %v653 = vsel %vm652, %v649, %v651
        %v655 = vmul.f32 %v523, %v653
        %v657 = vperm.slane %v655, 0
        %v658 = vperm.slane %v655, 1
        %v659 = vperm.slane %v655, 2
        %v660 = vperm.slane %v655, 3
        %v665 = vmul.f32 %v557, %v657
        %v666 = vmul.f32 %v558, %v658
        %v667 = vmul.f32 %v559, %v659
        %v668 = vmul.f32 %v560, %v660
        %v673 = vrot.slane %v666, 7
        %v674 = vrot.slane %v667, 6
        %v675 = vrot.slane %v668, 5
        %v676 = vsel %vm648, %v665, %v673
        %v677 = vsel %vm650, %v674, %v675
        %v678 = vsel %vm652, %v676, %v677
        %v680 = vsub.f32 %v525, %v678
        %v681 = vmul.f32 %v518, %v657
        %v682 = vmul.f32 %v519, %v658
        %v683 = vmul.f32 %v520, %v659
        %v684 = vmul.f32 %v521, %v660
        %v686 = vperm.slane %v680, 0
        %v687 = vperm.slane %v680, 1
        %v688 = vperm.slane %v680, 2
        %v689 = vperm.slane %v680, 3
        %v694 = vadd.f32 %v681, %v686
        %v695 = vadd.f32 %v682, %v687
        %v696 = vadd.f32 %v683, %v688
        %v697 = vadd.f32 %v684, %v689
        %v698 = vmul.f32 %v694, 0.5
        %v699 = vmul.f32 %v695, 0.5
        %v700 = vmul.f32 %v696, 0.5
        %v701 = vmul.f32 %v697, 0.5
        %v702 = vmul.f32 %v694, 0.70710677
        %v703 = vmul.f32 %v695, 0.70710677
        %v704 = vmul.f32 %v696, 0.70710677
        %v705 = vmul.f32 %v697, 0.70710677
        %v706 = vmul.f32 %v702, %v702
        %v707 = vmin.f32 16.0, %v706
        %v708 = vmul.f32 %v707, 2.1237322e-06
        %v709 = vadd.f32 %v708, 0.00028619796
        %v710 = vmul.f32 %v707, %v709
        %v711 = vadd.f32 %v710, 0.0036580483
        %v712 = vmul.f32 %v707, %v711
        %v713 = vadd.f32 %v712, 0.05243302
        %v714 = vmul.f32 %v707, %v713
        %v715 = vadd.f32 %v714, 0.18741608
        %v716 = vmul.f32 %v707, %v715
        %v717 = vadd.f32 %v716, 1.1283791
        %v718 = vmul.f32 %v702, %v717
        %v719 = vmul.f32 %v707, 3.8918573e-05
        %v720 = vadd.f32 %v719, 0.001143296
        %v721 = vmul.f32 %v707, %v720
        %v722 = vadd.f32 %v721, 0.014752088
        %v723 = vmul.f32 %v707, %v722
        %v724 = vadd.f32 %v723, 0.112945676
        %v725 = vmul.f32 %v707, %v724
        %v726 = vadd.f32 %v725, 0.4994258
        %v727 = vmul.f32 %v707, %v726
        %v728 = vadd.f32 %v727, 1.0
        %v729 = vrcp.pop %v728
        %v730 = vmul.f32 %v728, %v729
        %v731 = vsub.f32 1.0, %v730
        %v732 = vmul.f32 %v729, %v731
        %v733 = vadd.f32 %v729, %v732
        %vm734 = vweird.f32 %v728
        %vm735 = vweird.f32 %v729
        %vm736 = vmor %vm734, %vm735
        %v737 = vsel %vm736, %v729, %v733
        %v738 = vand.u32 2147483647, %v728
        %vm739 = vcmp.eq.f32.partialorder %v738, 8.507059e+37
        %v740 = vand.u32 %v728, 2147483648
        %v741 = vor.u32 1.1754944e-38, %v740
        %v742 = vsel %vm739, %v741, %v737
        %v743 = vmul.f32 %v718, %v742
        %v744 = vmin.f32 %v743, 1.0
        %v745 = vmax.f32 %v744, -1.0
        %v746 = vmul.f32 %v703, %v703
        %v747 = vmin.f32 16.0, %v746
        %v748 = vmul.f32 %v747, 2.1237322e-06
        %v749 = vadd.f32 %v748, 0.00028619796
        %v750 = vmul.f32 %v747, %v749
        %v751 = vadd.f32 %v750, 0.0036580483
        %v752 = vmul.f32 %v747, %v751
        %v753 = vadd.f32 %v752, 0.05243302
        %v754 = vmul.f32 %v747, %v753
        %v755 = vadd.f32 %v754, 0.18741608
        %v756 = vmul.f32 %v747, %v755
        %v757 = vadd.f32 %v756, 1.1283791
        %v758 = vmul.f32 %v703, %v757
        %v759 = vmul.f32 %v747, 3.8918573e-05
        %v760 = vadd.f32 %v759, 0.001143296
        %v761 = vmul.f32 %v747, %v760
        %v762 = vadd.f32 %v761, 0.014752088
        %v763 = vmul.f32 %v747, %v762
        %v764 = vadd.f32 %v763, 0.112945676
        %v765 = vmul.f32 %v747, %v764
        %v766 = vadd.f32 %v765, 0.4994258
        %v767 = vmul.f32 %v747, %v766
        %v768 = vadd.f32 %v767, 1.0
        %v769 = vrcp.pop %v768
        %v770 = vmul.f32 %v768, %v769
        %v771 = vsub.f32 1.0, %v770
        %v772 = vmul.f32 %v769, %v771
        %v773 = vadd.f32 %v769, %v772
        %vm774 = vweird.f32 %v768
        %vm775 = vweird.f32 %v769
        %vm776 = vmor %vm774, %vm775
        %v777 = vsel %vm776, %v769, %v773
        %v778 = vand.u32 2147483647, %v768
        %vm779 = vcmp.eq.f32.partialorder %v778, 8.507059e+37
        %v780 = vand.u32 %v768, 2147483648
        %v781 = vor.u32 1.1754944e-38, %v780
        %v782 = vsel %vm779, %v781, %v777
        %v783 = vmul.f32 %v758, %v782
        %v784 = vmin.f32 %v783, 1.0
        %v785 = vmax.f32 %v784, -1.0
        %v786 = vmul.f32 %v704, %v704
        %v787 = vmin.f32 16.0, %v786
        %v788 = vmul.f32 %v787, 2.1237322e-06
        %v789 = vadd.f32 %v788, 0.00028619796
        %v790 = vmul.f32 %v787, %v789
        %v791 = vadd.f32 %v790, 0.0036580483
        %v792 = vmul.f32 %v787, %v791
        %v793 = vadd.f32 %v792, 0.05243302
        %v794 = vmul.f32 %v787, %v793
        %v795 = vadd.f32 %v794, 0.18741608
        %v796 = vmul.f32 %v787, %v795
        %v797 = vadd.f32 %v796, 1.1283791
        %v798 = vmul.f32 %v704, %v797
        %v799 = vmul.f32 %v787, 3.8918573e-05
        %v800 = vadd.f32 %v799, 0.001143296
        %v801 = vmul.f32 %v787, %v800
        %v802 = vadd.f32 %v801, 0.014752088
        %v803 = vmul.f32 %v787, %v802
        %v804 = vadd.f32 %v803, 0.112945676
        %v805 = vmul.f32 %v787, %v804
        %v806 = vadd.f32 %v805, 0.4994258
        %v807 = vmul.f32 %v787, %v806
        %v808 = vadd.f32 %v807, 1.0
        %v809 = vrcp.pop %v808
        %v810 = vmul.f32 %v808, %v809
        %v811 = vsub.f32 1.0, %v810
        %v812 = vmul.f32 %v809, %v811
        %v813 = vadd.f32 %v809, %v812
        %vm814 = vweird.f32 %v808
        %vm815 = vweird.f32 %v809
        %vm816 = vmor %vm814, %vm815
        %v817 = vsel %vm816, %v809, %v813
        %v818 = vand.u32 2147483647, %v808
        %vm819 = vcmp.eq.f32.partialorder %v818, 8.507059e+37
        %v820 = vand.u32 %v808, 2147483648
        %v821 = vor.u32 1.1754944e-38, %v820
        %v822 = vsel %vm819, %v821, %v817
        %v823 = vmul.f32 %v798, %v822
        %v824 = vmin.f32 %v823, 1.0
        %v825 = vmax.f32 %v824, -1.0
        %v826 = vmul.f32 %v705, %v705
        %v827 = vmin.f32 16.0, %v826
        %v828 = vmul.f32 %v827, 2.1237322e-06
        %v829 = vadd.f32 %v828, 0.00028619796
        %v830 = vmul.f32 %v827, %v829
        %v831 = vadd.f32 %v830, 0.0036580483
        %v832 = vmul.f32 %v827, %v831
        %v833 = vadd.f32 %v832, 0.05243302
        %v834 = vmul.f32 %v827, %v833
        %v835 = vadd.f32 %v834, 0.18741608
        %v836 = vmul.f32 %v827, %v835
        %v837 = vadd.f32 %v836, 1.1283791
        %v838 = vmul.f32 %v705, %v837
        %v839 = vmul.f32 %v827, 3.8918573e-05
        %v840 = vadd.f32 %v839, 0.001143296
        %v841 = vmul.f32 %v827, %v840
        %v842 = vadd.f32 %v841, 0.014752088
        %v843 = vmul.f32 %v827, %v842
        %v844 = vadd.f32 %v843, 0.112945676
        %v845 = vmul.f32 %v827, %v844
        %v846 = vadd.f32 %v845, 0.4994258
        %v847 = vmul.f32 %v827, %v846
        %v848 = vadd.f32 %v847, 1.0
        %v849 = vrcp.pop %v848
        %v850 = vmul.f32 %v848, %v849
        %v851 = vsub.f32 1.0, %v850
        %v852 = vmul.f32 %v849, %v851
        %v853 = vadd.f32 %v849, %v852
        %vm854 = vweird.f32 %v848
        %vm855 = vweird.f32 %v849
        %vm856 = vmor %vm854, %vm855
        %v857 = vsel %vm856, %v849, %v853
        %v858 = vand.u32 2147483647, %v848
        %vm859 = vcmp.eq.f32.partialorder %v858, 8.507059e+37
        %v860 = vand.u32 %v848, 2147483648
        %v861 = vor.u32 1.1754944e-38, %v860
        %v862 = vsel %vm859, %v861, %v857
        %v863 = vmul.f32 %v838, %v862
        %v864 = vmin.f32 %v863, 1.0
        %v865 = vmax.f32 %v864, -1.0
        %v866 = vadd.f32 %v745, 1.0
        %v867 = vadd.f32 %v785, 1.0
        %v868 = vadd.f32 %v825, 1.0
        %v869 = vadd.f32 %v865, 1.0
        %v870 = vmul.f32 %v698, %v866
        %v871 = vmul.f32 %v699, %v867
        %v872 = vmul.f32 %v700, %v868
        %v873 = vmul.f32 %v701, %v869
        %v874 = vld [vmem:[#allocation4] sm:$0xc]
        %v875 = vld [vmem:[#allocation4 + $0x8] sm:$0xc]
        %v876 = vld [vmem:[#allocation4 + $0x10] sm:$0xc]
        %v877 = vld [vmem:[#allocation4 + $0x18] sm:$0xc]
        %v878 = vld [vmem:[#allocation4 + $0x6] ss:$0 sm:$0xff]
        %v883 = vrot.slane %v874, 2
        %v884 = vrot.slane %v875, 2
        %v885 = vrot.slane %v876, 2
        %v886 = vrot.slane %v877, 2
        %891 = vmatpush.xpose.msra.mxu0 0.0
        %892 = vmatpush.xpose.msra.mxu0 0.0
        %893 = vmatpush.xpose.msra.mxu0 0.0
        %894 = vmatpush.xpose.msra.mxu0 0.0
        %895 = vmatpush.xpose.msra.mxu0 0.0
        %896 = vmatpush.xpose.msra.mxu0 0.0
        %897 = vmatpush.xpose.msra.mxu0 0.0
        %898 = vmatpush.xpose.msra.mxu0 0.0
        %899 = vmatpush.xpose.msra.mxu0 0.0
        %900 = vmatpush.xpose.msra.mxu0 0.0
        %901 = vmatpush.xpose.msra.mxu0 0.0
        %902 = vmatpush.xpose.msra.mxu0 0.0
        %903 = vmatpush.xpose.msra.mxu0 0.0
        %904 = vmatpush.xpose.msra.mxu0 0.0
        %905 = vmatpush.xpose.msra.mxu0 0.0
        %906 = vmatpush.xpose.msra.mxu0 %v883
        %907 = vmatmul.f32.gmra.mxu0 %v870
        %v908 = vpop.f32.mrf.mxu0
        %v909 = vadd.f32 %v878, %v908
        %910 = vdwg.mxu0
        %911 = vmatpush.xpose.msra.mxu0 0.0
        %912 = vmatpush.xpose.msra.mxu0 0.0
        %913 = vmatpush.xpose.msra.mxu0 0.0
        %914 = vmatpush.xpose.msra.mxu0 0.0
        %915 = vmatpush.xpose.msra.mxu0 0.0
        %916 = vmatpush.xpose.msra.mxu0 0.0
        %917 = vmatpush.xpose.msra.mxu0 0.0
        %918 = vmatpush.xpose.msra.mxu0 0.0
        %919 = vmatpush.xpose.msra.mxu0 0.0
        %920 = vmatpush.xpose.msra.mxu0 0.0
        %921 = vmatpush.xpose.msra.mxu0 0.0
        %922 = vmatpush.xpose.msra.mxu0 0.0
        %923 = vmatpush.xpose.msra.mxu0 0.0
        %924 = vmatpush.xpose.msra.mxu0 0.0
        %925 = vmatpush.xpose.msra.mxu0 0.0
        %926 = vmatpush.xpose.msra.mxu0 %v884
        %927 = vmatmul.f32.gmra.mxu0 %v871
        %v928 = vpop.f32.mrf.mxu0
        %v929 = vadd.f32 %v909, %v928
        %930 = vdwg.mxu0
        %931 = vmatpush.xpose.msra.mxu0 0.0
        %932 = vmatpush.xpose.msra.mxu0 0.0
        %933 = vmatpush.xpose.msra.mxu0 0.0
        %934 = vmatpush.xpose.msra.mxu0 0.0
        %935 = vmatpush.xpose.msra.mxu0 0.0
        %936 = vmatpush.xpose.msra.mxu0 0.0
        %937 = vmatpush.xpose.msra.mxu0 0.0
        %938 = vmatpush.xpose.msra.mxu0 0.0
        %939 = vmatpush.xpose.msra.mxu0 0.0
        %940 = vmatpush.xpose.msra.mxu0 0.0
        %941 = vmatpush.xpose.msra.mxu0 0.0
        %942 = vmatpush.xpose.msra.mxu0 0.0
        %943 = vmatpush.xpose.msra.mxu0 0.0
        %944 = vmatpush.xpose.msra.mxu0 0.0
        %945 = vmatpush.xpose.msra.mxu0 0.0
        %946 = vmatpush.xpose.msra.mxu0 %v885
        %947 = vmatmul.f32.gmra.mxu0 %v872
        %v948 = vpop.f32.mrf.mxu0
        %v949 = vadd.f32 %v929, %v948
        %950 = vdwg.mxu0
        %951 = vmatpush.xpose.msra.mxu0 0.0
        %952 = vmatpush.xpose.msra.mxu0 0.0
        %953 = vmatpush.xpose.msra.mxu0 0.0
        %954 = vmatpush.xpose.msra.mxu0 0.0
        %955 = vmatpush.xpose.msra.mxu0 0.0
        %956 = vmatpush.xpose.msra.mxu0 0.0
        %957 = vmatpush.xpose.msra.mxu0 0.0
        %958 = vmatpush.xpose.msra.mxu0 0.0
        %959 = vmatpush.xpose.msra.mxu0 0.0
        %960 = vmatpush.xpose.msra.mxu0 0.0
        %961 = vmatpush.xpose.msra.mxu0 0.0
        %962 = vmatpush.xpose.msra.mxu0 0.0
        %963 = vmatpush.xpose.msra.mxu0 0.0
        %964 = vmatpush.xpose.msra.mxu0 0.0
        %965 = vmatpush.xpose.msra.mxu0 0.0
        %966 = vmatpush.xpose.msra.mxu0 %v886
        %967 = vmatmul.f32.gmra.mxu0 %v873
        %v968 = vpop.f32.mrf.mxu0
        %v969 = vadd.f32 %v949, %v968
        %970 = vdwg.mxu0
        %vm971 = vcmask 15360
        %972 = vst.msk [vmem:[%s241] sm:$0xff] %vm971, %v969
        %p973 = scmp.lt.s32.totalorder %s17, 3
        %s974 = scalar_select %p973, %s17, 3
        %s975 = smul.addr %s974, 8
        %s976 = scalar_lea.vmem %s4, %s975
        // Predicated region
        $region45: #{tpu_custom_call.1} parent=35 // pred_check
          %p977 = pneg %p129
        $region46: #{tpu_custom_call.1} parent=35 // pred_check_branch
          %979 = sbr.rel (%p977) target = $region48
        $region47: #{tpu_custom_call.1} parent=35 // pred_region
          _
        $region48: #{tpu_custom_call.1} parent=35 // pred_fallthru
          _
      $region36: #{tpu_custom_call.1} parent=5 // pred_fallthru
        _
      %p980 = scmp.le.s32.totalorder 2, %s12
      // Predicated region
      $region49: #{tpu_custom_call.1} parent=5 // pred_check
        %p981 = pneg %p980
      $region50: #{tpu_custom_call.1} parent=5 // pred_check_branch
        %983 = sbr.rel (%p981) target = $region52
      $region51: #{tpu_custom_call.1} parent=5 // pred_region
        %s984 = ssub.s32 %s12, 2
        // Predicated region
        $region53: #{tpu_custom_call.1} parent=51 // pred_check
          %p985 = pneg %p135
        $region54: #{tpu_custom_call.1} parent=51 // pred_check_branch
          %987 = sbr.rel (%p985) target = $region56
        $region55: #{tpu_custom_call.1} parent=51 // pred_region
          %p988 = scmp.lt.s32.totalorder %s18, 3
          %s989 = scalar_select %p988, %s18, 3
          %s990 = smul.addr %s989, 8
          %s991 = scalar_lea.vmem %s4, %s990
        $region56: #{tpu_custom_call.1} parent=51 // pred_fallthru
          _
      $region52: #{tpu_custom_call.1} parent=5 // pred_fallthru
        _
    $region6: #{tpu_custom_call.1} parent=1 // loop_footer
      %s16 = sadd.s32 1, %s12
    $region7: #{tpu_custom_call.1} parent=1 // loop_footer_branch
      %11 = sbr.rel target = $region3
    $region8: #{tpu_custom_call.1} parent=1 // loop_exit
      _
    %992 = vsyncpa [#allocation3], 1
    %s993 = scalar_lea.sflag [#allocation3], 1
    %994 = vsyncpa %s993, 1
    %995 = vsyncpa [#allocation5], 1

</llo_original>
